<compile_context>
chip_gen: v7x
topology: tpu7x:2x2x1
jax: 0.10.0
libtpu: 0.0.40
codegen_flags: <defaults>
</compile_context>

<pallas_src>
import jax
import jax.numpy as jnp
from jax.experimental import pallas as pl
from jax.experimental.pallas import tpu as pltpu

MAX_ACTION = 1.0  # gym BipedalWalkerHardcore-v3 action_space.high[0]

LANE = 128     # TPU vreg lane width
SUBLANE = 8    # TPU vreg sublane count (f32)


def _round_up(x, m):
    return ((x + m - 1) // m) * m


def _actor_layout(input_dims, fc1_dims, fc2_dims, n_actions):
    """Static (Python-int) layout of the packed, lane-aligned parameter slab."""
    in_pad = _round_up(input_dims, SUBLANE)    # sublanes of w1
    h1_pad = _round_up(fc1_dims, LANE)
    h2_pad = _round_up(fc2_dims, LANE)
    out_pad = _round_up(n_actions, LANE)
    width = max(h1_pad, h2_pad, out_pad)
    # Row offsets inside the slab; every segment starts on an 8-row boundary so
    # static ref slices stay (8,128)-tile aligned.
    w1_r = 0
    b1_r = w1_r + in_pad
    w2_r = b1_r + SUBLANE
    b2_r = w2_r + h1_pad
    w3_r = b2_r + SUBLANE
    b3_r = w3_r + h2_pad
    n_rows = b3_r + SUBLANE
    return dict(input_dims=input_dims, fc1_dims=fc1_dims, fc2_dims=fc2_dims,
                n_actions=n_actions, in_pad=in_pad, h1_pad=h1_pad, h2_pad=h2_pad,
                out_pad=out_pad, width=width, w1_r=w1_r, b1_r=b1_r, w2_r=w2_r,
                b2_r=b2_r, w3_r=w3_r, b3_r=b3_r, n_rows=n_rows)


def pack_actor_params(params, L):
    """Pack all weights/biases into one zero-padded [n_rows, width] f32 slab."""
    slab = jnp.zeros((L["n_rows"], L["width"]), jnp.float32)
    slab = slab.at[L["w1_r"]:L["w1_r"] + L["input_dims"], :L["fc1_dims"]].set(
        params["w1"].astype(jnp.float32))
    slab = slab.at[L["b1_r"], :L["fc1_dims"]].set(
        params["b1"].reshape(-1).astype(jnp.float32))
    slab = slab.at[L["w2_r"]:L["w2_r"] + L["fc1_dims"], :L["fc2_dims"]].set(
        params["w2"].astype(jnp.float32))
    slab = slab.at[L["b2_r"], :L["fc2_dims"]].set(
        params["b2"].reshape(-1).astype(jnp.float32))
    slab = slab.at[L["w3_r"]:L["w3_r"] + L["fc2_dims"], :L["n_actions"]].set(
        params["w3"].astype(jnp.float32))
    slab = slab.at[L["b3_r"], :L["n_actions"]].set(
        params["b3"].reshape(-1).astype(jnp.float32))
    return slab


def _make_actor_kernel(L, use_bf16):
    input_dims, n_actions = L["input_dims"], L["n_actions"]
    h1_pad, h2_pad = L["h1_pad"], L["h2_pad"]
    w1_r, b1_r, w2_r = L["w1_r"], L["b1_r"], L["w2_r"]
    b2_r, w3_r, b3_r = L["b2_r"], L["w3_r"], L["b3_r"]
    mm_dtype = jnp.bfloat16 if use_bf16 else jnp.float32

    def actor_kernel(x_ref, p_ref, o_ref):
        x = x_ref[...].astype(mm_dtype)                       # [tb, input_dims]
        # fc1 + ReLU (bias / accumulation / activations in f32)
        w1 = p_ref[w1_r:w1_r + input_dims, :].astype(mm_dtype)
        b1 = p_ref[b1_r:b1_r + 1, :]
        h1 = jnp.maximum(
            jnp.dot(x, w1, preferred_element_type=jnp.float32) + b1, 0.0)
        # fc2 + ReLU
        w2 = p_ref[w2_r:w2_r + h1_pad, :].astype(mm_dtype)
        b2 = p_ref[b2_r:b2_r + 1, :]
        h2 = jnp.maximum(
            jnp.dot(h1.astype(mm_dtype), w2,
                    preferred_element_type=jnp.float32) + b2, 0.0)
        # mu head + tanh * MAX_ACTION; only the real n_actions lanes are tanh'd/stored.
        w3 = p_ref[w3_r:w3_r + h2_pad, :].astype(mm_dtype)
        b3 = p_ref[b3_r:b3_r + 1, :]
        mu = jnp.dot(h2.astype(mm_dtype), w3,
                     preferred_element_type=jnp.float32) + b3
        o_ref[...] = (jnp.tanh(mu[:, :n_actions]) * MAX_ACTION).astype(o_ref.dtype)

    return actor_kernel


def actor_forward(state, params, *, tile_b=4096, use_bf16=False):
    """state: [B, input_dims] f32. params: dict of [in, out] weights + [1, out] biases.

    Batch-tiled grid (ragged tail handled by Pallas, no wrapper padding); weights
    packed into one VMEM-resident slab; narrow [B, n_actions] HBM output."""
    B, input_dims = state.shape
    fc1_dims = params["w1"].shape[1]
    fc2_dims = params["w2"].shape[1]
    n_actions = params["w3"].shape[1]
    L = _actor_layout(input_dims, fc1_dims, fc2_dims, n_actions)

    slab = pack_actor_params(params, L)

    # Batch tile: multiple of 8 sublanes; no padding of the state itself.
    tb = min(_round_up(tile_b, SUBLANE), _round_up(B, SUBLANE))
    # v7x megacore: keep >= 2 grid steps when the batch allows so the "parallel"
    # axis actually splits across both TensorCores (no-op on v5e/v6e).
    if B > 2 * SUBLANE:
        tb = min(tb, _round_up(pl.cdiv(B, 2), SUBLANE))
    grid = (pl.cdiv(B, tb),)

    x = state.astype(jnp.bfloat16 if use_bf16 else jnp.float32)

    cost = pl.CostEstimate(
        flops=2 * B * (input_dims * L["h1_pad"]
                       + L["h1_pad"] * L["h2_pad"]
                       + L["h2_pad"] * L["out_pad"]),
        transcendentals=B * n_actions,
        bytes_accessed=int(x.size * x.dtype.itemsize
                           + slab.size * 4
                           + B * n_actions * 4),
    )

    out = pl.pallas_call(
        _make_actor_kernel(L, use_bf16),
        out_shape=jax.ShapeDtypeStruct((B, n_actions), jnp.float32),
        grid=grid,
        in_specs=[
            # state tiles: last dim == full array dim, rows tiled over the grid
            pl.BlockSpec((tb, input_dims), lambda i: (i, 0)),
            # packed params: constant index_map -> fetched once, VMEM-resident
            pl.BlockSpec((L["n_rows"], L["width"]), lambda i: (0, 0)),
        ],
        # Narrow output: only the real action lanes are written back to HBM.
        out_specs=pl.BlockSpec((tb, n_actions), lambda i: (i, 0)),
        compiler_params=pltpu.CompilerParams(
            dimension_semantics=("parallel",)),   # megacore split on v7x
        cost_estimate=cost,
    )(x, slab)

    return out


def init_actor_params(key, input_dims, fc1_dims, fc2_dims, n_actions):
    """PyTorch nn.Linear-style init (uniform +/- 1/sqrt(fan_in)); weights stored [in, out]."""
    ks = jax.random.split(key, 6)

    def linear(kw, kb, fan_in, fan_out):
        bound = 1.0 / jnp.sqrt(jnp.float32(fan_in))
        w = jax.random.uniform(kw, (fan_in, fan_out), jnp.float32, -bound, bound)
        b = jax.random.uniform(kb, (1, fan_out), jnp.float32, -bound, bound)
        return w, b

    w1, b1 = linear(ks[0], ks[1], input_dims, fc1_dims)
    w2, b2 = linear(ks[2], ks[3], fc1_dims, fc2_dims)
    w3, b3 = linear(ks[4], ks[5], fc2_dims, n_actions)
    return {"w1": w1, "b1": b1, "w2": w2, "b2": b2, "w3": w3, "b3": b3}


if __name__ == "__main__":
    # Small shapes consistent with the module: BipedalWalker obs dim 24, 4 actions.
    input_dims, fc1_dims, fc2_dims, n_actions = 24, 32, 32, 4

    key = jax.random.PRNGKey(0)
    k_state, k_state2, k_params = jax.random.split(key, 3)
    params = init_actor_params(k_params, input_dims, fc1_dims, fc2_dims, n_actions)

    def ref_fwd(s):
        h1 = jnp.maximum(s @ params["w1"] + params["b1"], 0.0)
        h2 = jnp.maximum(h1 @ params["w2"] + params["b2"], 0.0)
        return jnp.tanh(h2 @ params["w3"] + params["b3"]) * MAX_ACTION

    # 1) Tiny batch (single ragged tile, f32 path).
    state = jax.random.normal(k_state, (2, input_dims), jnp.float32)
    out = jax.block_until_ready(actor_forward(state, params))
    assert out.shape == (2, n_actions)
    assert jnp.allclose(out, ref_fwd(state), atol=1e-5, rtol=1e-5)

    # 2) Multi-tile batch with a ragged tail (tile_b=8 -> grid of 3, last block
    #    partially out of bounds) to exercise the grid + resident-weight path.
    state2 = jax.random.normal(k_state2, (20, input_dims), jnp.float32)
    out2 = jax.block_until_ready(actor_forward(state2, params, tile_b=8))
    assert out2.shape == (20, n_actions)
    assert jnp.allclose(out2, ref_fwd(state2), atol=1e-5, rtol=1e-5)

    # 3) Optional bf16 matmul-operand path (f32 accumulation), looser tolerance.
    out3 = jax.block_until_ready(
        actor_forward(state2, params, tile_b=8, use_bf16=True))
    assert out3.shape == (20, n_actions)
    assert jnp.allclose(out3, ref_fwd(state2), atol=5e-2, rtol=5e-2)

    print("KERNEL_OK")
</pallas_src>

<mosaic_0001>
module attributes {stable_mosaic.version = 11 : i64} {
  func.func @actor_kernel(%arg0: i32, %arg1: memref<8x24xf32, #tpu.memory_space<vmem>>, %arg2: memref<304x128xf32, #tpu.memory_space<vmem>>, %arg3: memref<8x4xf32, #tpu.memory_space<vmem>>) attributes {dimension_semantics = [#tpu.dimension_semantics<parallel>], iteration_bounds = array<i64: 1>, scalar_prefetch = 0 : i64, scratch_operands = 0 : i64, tpu.core_type = #tpu.core_type<tc>, window_params = [{transform_indices = @transform_0, window_bounds = array<i64: 8, 24>}, {pipeline_mode = #tpu.pipeline_mode<synchronous>, transform_indices = @transform_1, window_bounds = array<i64: 304, 128>}, {transform_indices = @transform_2, window_bounds = array<i64: 8, 4>}]} {
    %c0 = arith.constant 0 : index
    %c0_0 = arith.constant 0 : index
    %0 = vector.load %arg1[%c0, %c0_0] : memref<8x24xf32, #tpu.memory_space<vmem>>, vector<8x24xf32>
    %c0_1 = arith.constant 0 : index
    %c0_2 = arith.constant 0 : index
    %1 = vector.load %arg2[%c0_1, %c0_2] : memref<304x128xf32, #tpu.memory_space<vmem>>, vector<24x128xf32>
    %c24 = arith.constant 24 : index
    %c0_3 = arith.constant 0 : index
    %2 = vector.load %arg2[%c24, %c0_3] : memref<304x128xf32, #tpu.memory_space<vmem>>, vector<1x128xf32>
    %cst = arith.constant dense<0.000000e+00> : vector<8x128xf32>
    %3 = tpu.matmul %0, %1, %cst {dimension_numbers = #tpu.dot_dimension_numbers<[1], [0], [0], [1], [0, 0, 1, 1], [], []>} : vector<8x24xf32>, vector<24x128xf32>, vector<8x128xf32> -> vector<8x128xf32>
    %4 = vector.broadcast %2 : vector<1x128xf32> to vector<8x128xf32>
    %5 = arith.addf %3, %4 : vector<8x128xf32>
    %cst_4 = arith.constant 0.000000e+00 : f32
    %6 = vector.broadcast %cst_4 : f32 to vector<8x128xf32>
    %7 = arith.maximumf %5, %6 : vector<8x128xf32>
    %c32 = arith.constant 32 : index
    %c0_5 = arith.constant 0 : index
    %8 = vector.load %arg2[%c32, %c0_5] : memref<304x128xf32, #tpu.memory_space<vmem>>, vector<128x128xf32>
    %c160 = arith.constant 160 : index
    %c0_6 = arith.constant 0 : index
    %9 = vector.load %arg2[%c160, %c0_6] : memref<304x128xf32, #tpu.memory_space<vmem>>, vector<1x128xf32>
    %cst_7 = arith.constant dense<0.000000e+00> : vector<8x128xf32>
    %10 = tpu.matmul %7, %8, %cst_7 {dimension_numbers = #tpu.dot_dimension_numbers<[1], [0], [0], [1], [0, 0, 1, 1], [], []>} : vector<8x128xf32>, vector<128x128xf32>, vector<8x128xf32> -> vector<8x128xf32>
    %11 = vector.broadcast %9 : vector<1x128xf32> to vector<8x128xf32>
    %12 = arith.addf %10, %11 : vector<8x128xf32>
    %cst_8 = arith.constant 0.000000e+00 : f32
    %13 = vector.broadcast %cst_8 : f32 to vector<8x128xf32>
    %14 = arith.maximumf %12, %13 : vector<8x128xf32>
    %c168 = arith.constant 168 : index
    %c0_9 = arith.constant 0 : index
    %15 = vector.load %arg2[%c168, %c0_9] : memref<304x128xf32, #tpu.memory_space<vmem>>, vector<128x128xf32>
    %c296 = arith.constant 296 : index
    %c0_10 = arith.constant 0 : index
    %16 = vector.load %arg2[%c296, %c0_10] : memref<304x128xf32, #tpu.memory_space<vmem>>, vector<1x128xf32>
    %cst_11 = arith.constant dense<0.000000e+00> : vector<8x128xf32>
    %17 = tpu.matmul %14, %15, %cst_11 {dimension_numbers = #tpu.dot_dimension_numbers<[1], [0], [0], [1], [0, 0, 1, 1], [], []>} : vector<8x128xf32>, vector<128x128xf32>, vector<8x128xf32> -> vector<8x128xf32>
    %18 = vector.broadcast %16 : vector<1x128xf32> to vector<8x128xf32>
    %19 = arith.addf %17, %18 : vector<8x128xf32>
    %20 = vector.extract_strided_slice %19 {offsets = [0, 0], sizes = [8, 4], strides = [1, 1]} : vector<8x128xf32> to vector<8x4xf32>
    %21 = math.tanh %20 : vector<8x4xf32>
    %cst_12 = arith.constant 1.000000e+00 : f32
    %22 = vector.broadcast %cst_12 : f32 to vector<8x4xf32>
    %23 = arith.mulf %21, %22 : vector<8x4xf32>
    %c0_13 = arith.constant 0 : index
    %c0_14 = arith.constant 0 : index
    %24 = vector.load %arg3[%c0_13, %c0_14] : memref<8x4xf32, #tpu.memory_space<vmem>>, vector<8x4xf32>
    tpu.vector_store %arg3[%c0_13, %c0_14], %23 {strides = array<i32>} : memref<8x4xf32, #tpu.memory_space<vmem>>, vector<8x4xf32>,
    return
  }
  func.func @transform_0(%arg0: i32) -> (i32, i32) {
    %c0_i32 = arith.constant 0 : i32
    %c0_i32_0 = arith.constant 0 : i32
    return %arg0, %c0_i32 : i32, i32
  }
  func.func @transform_1(%arg0: i32) -> (i32, i32) {
    %c0_i32 = arith.constant 0 : i32
    %c0_i32_0 = arith.constant 0 : i32
    %c0_i32_1 = arith.constant 0 : i32
    return %c0_i32, %c0_i32_0 : i32, i32
  }
  func.func @transform_2(%arg0: i32) -> (i32, i32) {
    %c0_i32 = arith.constant 0 : i32
    %c0_i32_0 = arith.constant 0 : i32
    return %arg0, %c0_i32 : i32, i32
  }
}

</mosaic_0001>

<llo_original>
// kernel: tpu_custom_call.1
$region0: #{tpu_custom_call.1}
  #allocation0 [shape = 'u32[]', space=smem, size = 0x4, offset = 0x4, fixed_abs, tag = 'smem constant byte address 0x4 - core index']
  #allocation1 [shape = 'u32[144,128]{1,0:T(1,128)}', space=vmem, size = 0x12000, scoped, tag = 'internal scratch']
  %s0 = inlined_call_operand.hbm [shape: f32[2,24], index: 0, kind: input, shape index: {}]
  %s1 = inlined_call_operand.hbm [shape: f32[304,128], index: 1, kind: input, shape index: {}]
  %s2 = inlined_call_operand.hbm [shape: f32[2,4], index: 2, kind: output, shape index: {}]
  %s3 = sld [smem:[#allocation0]]
  $region26: #{tpu_custom_call.1} parent=0
    _
  %s5 = ssub.s32 1, %s3
  %s6 = scalar_select 0, %s5, %s3
  $region1: #{tpu_custom_call.1} parent=0
    #allocation2 [shape = 'u8[4096]{0}', space=vmem, size = 0x1000, scoped, tag = 'input window, operand 0, single buffered']
    #allocation3 [shape = 's32[1]{0}', space=sflag, size = 0x4, scoped, tag = 'scoped memory for tpu_custom_call.1']
    #allocation4 [shape = 's32[1]{0}', space=sflag, size = 0x4, scoped, tag = 'scoped memory for tpu_custom_call.1']
    #allocation5 [shape = 'u8[155648]{0}', space=vmem, size = 0x26000, scoped, tag = 'input window, operand 1, single buffered']
    #allocation6 [shape = 's32[1]{0}', space=sflag, size = 0x4, scoped, tag = 'scoped memory for tpu_custom_call.1']
    #allocation7 [shape = 'u8[4096]{0}', space=vmem, size = 0x1000, scoped, tag = 'output window, operand 0, single buffered']
    %7 = vsyncpa [#allocation3], 0
    %8 = vsyncpa [#allocation6], 0
    %9 = vsyncpa [#allocation4], 0
    // Predicated region
    $region2: #{tpu_custom_call.1} parent=1 // pred_check
      _
    $region3: #{tpu_custom_call.1} parent=1 // pred_check_branch
      %11 = sbr.rel (0) target = $region5
    $region4: #{tpu_custom_call.1} parent=1 // pred_region
      %s13 = ssub.s32 128, 32
      %14 = vsyncadd [#allocation3], %s13
      %s15 = sshll.u32 [#allocation2], 4
      %s16 = int_to_ptr.vmem [resolvable:$true] %s15
      %21 = dma.hbm_to_vmem [thread:$0]  %s0, 32, %s16, [#allocation3], 32, 32, 2
    $region5: #{tpu_custom_call.1} parent=1 // pred_fallthru
      _
    // Predicated region
    $region6: #{tpu_custom_call.1} parent=1 // pred_check
      _
    $region7: #{tpu_custom_call.1} parent=1 // pred_check_branch
      %23 = sbr.rel (0) target = $region9
    $region8: #{tpu_custom_call.1} parent=1 // pred_region
      %s25 = ssub.s32 4864, 4864
      %26 = vsyncadd [#allocation6], %s25
      %s27 = sshll.u32 [#allocation5], 4
      %s28 = int_to_ptr.vmem [resolvable:$true] %s27
      %33 = dma.hbm_to_vmem [thread:$0]  %s1, 4864, %s28, [#allocation6], 128, 128, 8
    $region9: #{tpu_custom_call.1} parent=1 // pred_fallthru
      _
    // Predicated region
    $region10: #{tpu_custom_call.1} parent=1 // pred_check
      _
    $region11: #{tpu_custom_call.1} parent=1 // pred_check_branch
      %35 = sbr.rel (0) target = $region13
    $region12: #{tpu_custom_call.1} parent=1 // pred_region
      %36 = dma.done [#allocation3], 128
    $region13: #{tpu_custom_call.1} parent=1 // pred_fallthru
      _
    // Predicated region
    $region14: #{tpu_custom_call.1} parent=1 // pred_check
      _
    $region15: #{tpu_custom_call.1} parent=1 // pred_check_branch
      %38 = sbr.rel (0) target = $region17
    $region16: #{tpu_custom_call.1} parent=1 // pred_region
      %39 = dma.done [#allocation6], 4864
    $region17: #{tpu_custom_call.1} parent=1 // pred_fallthru
      _
    %v40 = vld [vmem:[#allocation2] sm:$0xff]
    %v41 = vld [vmem:[#allocation5] sm:$0xff]
    %v42 = vld [vmem:[#allocation5 + $0x8] sm:$0xff]
    %v43 = vld [vmem:[#allocation5 + $0x10] sm:$0xff]
    %v44 = vld [vmem:[#allocation5 + $0x18] sm:$0x1]
    %v45 = vlaneseq
    %v46 = vshrl.u32 %v45, 7
    %v47 = vsub.s32 0, %v46
    %v48 = vrot.slane %v44, %v47
    %vm49 = vcmask 195584
    %v51 = vsel %vm49, %v40, 0
    %53 = vmatprep.subr.mxu0 0.0
    %54 = vmatpush1.msra.mxu0 %v41
    %55 = vmatprep.subr.mxu0 0.0
    %56 = vmatpush1.msra.mxu0 %v42
    %57 = vmatprep.subr.mxu0 0.0
    %58 = vmatpush1.msra.mxu0 %v43
    %59 = vmatprep.subr.mxu0 0.0
    %60 = vmatpush1.msra.mxu0 0.0
    %61 = vmatprep.subr.mxu0 0.0
    %62 = vmatpush1.msra.mxu0 0.0
    %63 = vmatprep.subr.mxu0 0.0
    %64 = vmatpush1.msra.mxu0 0.0
    %65 = vmatprep.subr.mxu0 0.0
    %66 = vmatpush1.msra.mxu0 0.0
    %67 = vmatprep.subr.mxu0 0.0
    %68 = vmatpush1.msra.mxu0 0.0
    %69 = vmatprep.subr.mxu0 0.0
    %70 = vmatpush1.msra.mxu0 0.0
    %71 = vmatprep.subr.mxu0 0.0
    %72 = vmatpush1.msra.mxu0 0.0
    %73 = vmatprep.subr.mxu0 0.0
    %74 = vmatpush1.msra.mxu0 0.0
    %75 = vmatprep.subr.mxu0 0.0
    %76 = vmatpush1.msra.mxu0 0.0
    %77 = vmatprep.subr.mxu0 0.0
    %78 = vmatpush1.msra.mxu0 0.0
    %79 = vmatprep.subr.mxu0 0.0
    %80 = vmatpush1.msra.mxu0 0.0
    %81 = vmatprep.subr.mxu0 0.0
    %82 = vmatpush1.msra.mxu0 0.0
    %83 = vmatprep.subr.mxu0 0.0
    %84 = vmatpush1.msra.mxu0 0.0
    %85 = vmatprep.subr.mxu0 0.0
    %86 = vmatpush1.msra.mxu0 0.0
    %87 = vmatprep.subr.mxu0 0.0
    %88 = vmatpush1.msra.mxu0 0.0
    %89 = vmatprep.subr.mxu0 0.0
    %90 = vmatpush1.msra.mxu0 0.0
    %91 = vmatprep.subr.mxu0 0.0
    %92 = vmatpush1.msra.mxu0 0.0
    %93 = vmatprep.subr.mxu0 0.0
    %94 = vmatpush1.msra.mxu0 0.0
    %95 = vmatprep.subr.mxu0 0.0
    %96 = vmatpush1.msra.mxu0 0.0
    %97 = vmatprep.subr.mxu0 0.0
    %98 = vmatpush1.msra.mxu0 0.0
    %99 = vmatprep.subr.mxu0 0.0
    %100 = vmatpush1.msra.mxu0 0.0
    %101 = vmatprep.subr.mxu0 0.0
    %102 = vmatpush1.msra.mxu0 0.0
    %103 = vmatprep.subr.mxu0 0.0
    %104 = vmatpush1.msra.mxu0 0.0
    %105 = vmatprep.subr.mxu0 0.0
    %106 = vmatpush1.msra.mxu0 0.0
    %107 = vmatprep.subr.mxu0 0.0
    %108 = vmatpush1.msra.mxu0 0.0
    %109 = vmatprep.subr.mxu0 0.0
    %110 = vmatpush1.msra.mxu0 0.0
    %111 = vmatprep.subr.mxu0 0.0
    %112 = vmatpush1.msra.mxu0 0.0
    %113 = vmatprep.subr.mxu0 0.0
    %114 = vmatpush1.msra.mxu0 0.0
    %115 = vmatprep.subr.mxu0 0.0
    %116 = vmatpush1.msra.mxu0 0.0
    %117 = vmatprep.mubr.f32.mxu0 0.0
    %118 = vmatmul.mubr.f32.gmra.mrb[0].mxu0 %v51
    %v119 = vpop.f32.mrb[0].mxu0
    %v120 = vadd.f32 %v48, %v119
    %v121 = vpop.f32.mrb[0].mxu0
    %122 = vdwg.mxu0
    %v123 = vmax.f32 %v120, 0.0
    %v124 = vld [vmem:[#allocation5 + $0x20] sm:$0xff]
    %v125 = vld [vmem:[#allocation5 + $0x28] sm:$0xff]
    %v126 = vld [vmem:[#allocation5 + $0x30] sm:$0xff]
    %v127 = vld [vmem:[#allocation5 + $0x38] sm:$0xff]
    %v128 = vld [vmem:[#allocation5 + $0x40] sm:$0xff]
    %v129 = vld [vmem:[#allocation5 + $0x48] sm:$0xff]
    %v130 = vld [vmem:[#allocation5 + $0x50] sm:$0xff]
    %v131 = vld [vmem:[#allocation5 + $0x58] sm:$0xff]
    %v132 = vld [vmem:[#allocation5 + $0x60] sm:$0xff]
    %v133 = vld [vmem:[#allocation5 + $0x68] sm:$0xff]
    %v134 = vld [vmem:[#allocation5 + $0x70] sm:$0xff]
    %v135 = vld [vmem:[#allocation5 + $0x78] sm:$0xff]
    %v136 = vld [vmem:[#allocation5 + $0x80] sm:$0xff]
    %v137 = vld [vmem:[#allocation5 + $0x88] sm:$0xff]
    %v138 = vld [vmem:[#allocation5 + $0x90] sm:$0xff]
    %v139 = vld [vmem:[#allocation5 + $0x98] sm:$0xff]
    %v140 = vld [vmem:[#allocation5 + $0xa0] sm:$0x1]
    %v141 = vlaneseq
    %v142 = vshrl.u32 %v141, 7
    %v143 = vsub.s32 0, %v142
    %v144 = vrot.slane %v140, %v143
    %145 = vmatprep.subr.mxu0 0.0
    %146 = vmatpush1.msra.mxu0 %v124
    %147 = vmatprep.subr.mxu0 0.0
    %148 = vmatpush1.msra.mxu0 %v125
    %149 = vmatprep.subr.mxu0 0.0
    %150 = vmatpush1.msra.mxu0 %v126
    %151 = vmatprep.subr.mxu0 0.0
    %152 = vmatpush1.msra.mxu0 %v127
    %153 = vmatprep.subr.mxu0 0.0
    %154 = vmatpush1.msra.mxu0 %v128
    %155 = vmatprep.subr.mxu0 0.0
    %156 = vmatpush1.msra.mxu0 %v129
    %157 = vmatprep.subr.mxu0 0.0
    %158 = vmatpush1.msra.mxu0 %v130
    %159 = vmatprep.subr.mxu0 0.0
    %160 = vmatpush1.msra.mxu0 %v131
    %161 = vmatprep.subr.mxu0 0.0
    %162 = vmatpush1.msra.mxu0 %v132
    %163 = vmatprep.subr.mxu0 0.0
    %164 = vmatpush1.msra.mxu0 %v133
    %165 = vmatprep.subr.mxu0 0.0
    %166 = vmatpush1.msra.mxu0 %v134
    %167 = vmatprep.subr.mxu0 0.0
    %168 = vmatpush1.msra.mxu0 %v135
    %169 = vmatprep.subr.mxu0 0.0
    %170 = vmatpush1.msra.mxu0 %v136
    %171 = vmatprep.subr.mxu0 0.0
    %172 = vmatpush1.msra.mxu0 %v137
    %173 = vmatprep.subr.mxu0 0.0
    %174 = vmatpush1.msra.mxu0 %v138
    %175 = vmatprep.subr.mxu0 0.0
    %176 = vmatpush1.msra.mxu0 %v139
    %177 = vmatprep.subr.mxu0 0.0
    %178 = vmatpush1.msra.mxu0 0.0
    %179 = vmatprep.subr.mxu0 0.0
    %180 = vmatpush1.msra.mxu0 0.0
    %181 = vmatprep.subr.mxu0 0.0
    %182 = vmatpush1.msra.mxu0 0.0
    %183 = vmatprep.subr.mxu0 0.0
    %184 = vmatpush1.msra.mxu0 0.0
    %185 = vmatprep.subr.mxu0 0.0
    %186 = vmatpush1.msra.mxu0 0.0
    %187 = vmatprep.subr.mxu0 0.0
    %188 = vmatpush1.msra.mxu0 0.0
    %189 = vmatprep.subr.mxu0 0.0
    %190 = vmatpush1.msra.mxu0 0.0
    %191 = vmatprep.subr.mxu0 0.0
    %192 = vmatpush1.msra.mxu0 0.0
    %193 = vmatprep.subr.mxu0 0.0
    %194 = vmatpush1.msra.mxu0 0.0
    %195 = vmatprep.subr.mxu0 0.0
    %196 = vmatpush1.msra.mxu0 0.0
    %197 = vmatprep.subr.mxu0 0.0
    %198 = vmatpush1.msra.mxu0 0.0
    %199 = vmatprep.subr.mxu0 0.0
    %200 = vmatpush1.msra.mxu0 0.0
    %201 = vmatprep.subr.mxu0 0.0
    %202 = vmatpush1.msra.mxu0 0.0
    %203 = vmatprep.subr.mxu0 0.0
    %204 = vmatpush1.msra.mxu0 0.0
    %205 = vmatprep.subr.mxu0 0.0
    %206 = vmatpush1.msra.mxu0 0.0
    %207 = vmatprep.subr.mxu0 0.0
    %208 = vmatpush1.msra.mxu0 0.0
    %209 = vmatprep.mubr.f32.mxu0 0.0
    %210 = vmatmul.mubr.f32.gmra.mrb[0].mxu0 %v123
    %v211 = vpop.f32.mrb[0].mxu0
    %v212 = vadd.f32 %v144, %v211
    %v213 = vpop.f32.mrb[0].mxu0
    %214 = vdwg.mxu0
    %v215 = vmax.f32 %v212, 0.0
    %v216 = vld [vmem:[#allocation5 + $0xa8] sm:$0xff]
    %v217 = vld [vmem:[#allocation5 + $0xb0] sm:$0xff]
    %v218 = vld [vmem:[#allocation5 + $0xb8] sm:$0xff]
    %v219 = vld [vmem:[#allocation5 + $0xc0] sm:$0xff]
    %v220 = vld [vmem:[#allocation5 + $0xc8] sm:$0xff]
    %v221 = vld [vmem:[#allocation5 + $0xd0] sm:$0xff]
    %v222 = vld [vmem:[#allocation5 + $0xd8] sm:$0xff]
    %v223 = vld [vmem:[#allocation5 + $0xe0] sm:$0xff]
    %v224 = vld [vmem:[#allocation5 + $0xe8] sm:$0xff]
    %v225 = vld [vmem:[#allocation5 + $0xf0] sm:$0xff]
    %v226 = vld [vmem:[#allocation5 + $0xf8] sm:$0xff]
    %v227 = vld [vmem:[#allocation5 + $0x100] sm:$0xff]
    %v228 = vld [vmem:[#allocation5 + $0x108] sm:$0xff]
    %v229 = vld [vmem:[#allocation5 + $0x110] sm:$0xff]
    %v230 = vld [vmem:[#allocation5 + $0x118] sm:$0xff]
    %v231 = vld [vmem:[#allocation5 + $0x120] sm:$0xff]
    %v232 = vld [vmem:[#allocation5 + $0x128] sm:$0x1]
    %v233 = vlaneseq
    %v234 = vshrl.u32 %v233, 7
    %v235 = vsub.s32 0, %v234
    %v236 = vrot.slane %v232, %v235
    %237 = vmatprep.subr.mxu0 0.0
    %238 = vmatpush1.msra.mxu0 %v216
    %239 = vmatprep.subr.mxu0 0.0
    %240 = vmatpush1.msra.mxu0 %v217
    %241 = vmatprep.subr.mxu0 0.0
    %242 = vmatpush1.msra.mxu0 %v218
    %243 = vmatprep.subr.mxu0 0.0
    %244 = vmatpush1.msra.mxu0 %v219
    %245 = vmatprep.subr.mxu0 0.0
    %246 = vmatpush1.msra.mxu0 %v220
    %247 = vmatprep.subr.mxu0 0.0
    %248 = vmatpush1.msra.mxu0 %v221
    %249 = vmatprep.subr.mxu0 0.0
    %250 = vmatpush1.msra.mxu0 %v222
    %251 = vmatprep.subr.mxu0 0.0
    %252 = vmatpush1.msra.mxu0 %v223
    %253 = vmatprep.subr.mxu0 0.0
    %254 = vmatpush1.msra.mxu0 %v224
    %255 = vmatprep.subr.mxu0 0.0
    %256 = vmatpush1.msra.mxu0 %v225
    %257 = vmatprep.subr.mxu0 0.0
    %258 = vmatpush1.msra.mxu0 %v226
    %259 = vmatprep.subr.mxu0 0.0
    %260 = vmatpush1.msra.mxu0 %v227
    %261 = vmatprep.subr.mxu0 0.0
    %262 = vmatpush1.msra.mxu0 %v228
    %263 = vmatprep.subr.mxu0 0.0
    %264 = vmatpush1.msra.mxu0 %v229
    %265 = vmatprep.subr.mxu0 0.0
    %266 = vmatpush1.msra.mxu0 %v230
    %267 = vmatprep.subr.mxu0 0.0
    %268 = vmatpush1.msra.mxu0 %v231
    %269 = vmatprep.subr.mxu0 0.0
    %270 = vmatpush1.msra.mxu0 0.0
    %271 = vmatprep.subr.mxu0 0.0
    %272 = vmatpush1.msra.mxu0 0.0
    %273 = vmatprep.subr.mxu0 0.0
    %274 = vmatpush1.msra.mxu0 0.0
    %275 = vmatprep.subr.mxu0 0.0
    %276 = vmatpush1.msra.mxu0 0.0
    %277 = vmatprep.subr.mxu0 0.0
    %278 = vmatpush1.msra.mxu0 0.0
    %279 = vmatprep.subr.mxu0 0.0
    %280 = vmatpush1.msra.mxu0 0.0
    %281 = vmatprep.subr.mxu0 0.0
    %282 = vmatpush1.msra.mxu0 0.0
    %283 = vmatprep.subr.mxu0 0.0
    %284 = vmatpush1.msra.mxu0 0.0
    %285 = vmatprep.subr.mxu0 0.0
    %286 = vmatpush1.msra.mxu0 0.0
    %287 = vmatprep.subr.mxu0 0.0
    %288 = vmatpush1.msra.mxu0 0.0
    %289 = vmatprep.subr.mxu0 0.0
    %290 = vmatpush1.msra.mxu0 0.0
    %291 = vmatprep.subr.mxu0 0.0
    %292 = vmatpush1.msra.mxu0 0.0
    %293 = vmatprep.subr.mxu0 0.0
    %294 = vmatpush1.msra.mxu0 0.0
    %295 = vmatprep.subr.mxu0 0.0
    %296 = vmatpush1.msra.mxu0 0.0
    %297 = vmatprep.subr.mxu0 0.0
    %298 = vmatpush1.msra.mxu0 0.0
    %299 = vmatprep.subr.mxu0 0.0
    %300 = vmatpush1.msra.mxu0 0.0
    %301 = vmatprep.mubr.f32.mxu0 0.0
    %302 = vmatmul.mubr.f32.gmra.mrb[0].mxu0 %v215
    %v303 = vpop.f32.mrb[0].mxu0
    %v304 = vadd.f32 %v236, %v303
    %v305 = vpop.f32.mrb[0].mxu0
    %306 = vdwg.mxu0
    %v307 = vtanh.pop %v304
    %vm308 = vcmask 31744
    %309 = vst.msk [vmem:[#allocation7] sm:$0xff] %vm308, %v307
    // Predicated region
    $region18: #{tpu_custom_call.1} parent=1 // pred_check
      _
    $region19: #{tpu_custom_call.1} parent=1 // pred_check_branch
      %311 = sbr.rel (0) target = $region21
    $region20: #{tpu_custom_call.1} parent=1 // pred_region
      %s313 = ssub.s32 128, 32
      %314 = vsyncadd [#allocation4], %s313
      %s315 = sshll.u32 [#allocation7], 4
      %s316 = int_to_ptr.vmem [resolvable:$true] %s315
      %321 = dma.vmem_to_hbm [thread:$0]  %s316, 32, %s2, [#allocation4], 32, 32, 2
    $region21: #{tpu_custom_call.1} parent=1 // pred_fallthru
      _
    // Predicated region
    $region22: #{tpu_custom_call.1} parent=1 // pred_check
      _
    $region23: #{tpu_custom_call.1} parent=1 // pred_check_branch
      %323 = sbr.rel (0) target = $region25
    $region24: #{tpu_custom_call.1} parent=1 // pred_region
      %324 = dma.done [#allocation4], 128
    $region25: #{tpu_custom_call.1} parent=1 // pred_fallthru
      _
    %325 = vsyncpa [#allocation3], 1
    %326 = vsyncpa [#allocation6], 1
    %327 = vsyncpa [#allocation4], 1

</llo_original>
